<compile_context>
chip_gen: v7x
topology: tpu7x:2x2x1
jax: 0.10.0
libtpu: 0.0.40
codegen_flags: <defaults>
</compile_context>

<pallas_src>
import jax
import jax.numpy as jnp
from jax import lax
from jax.experimental import pallas as pl
from jax.experimental.pallas import tpu as pltpu

KH = KW = 2  # kernel_size = 2, stride = 2, padding = 0 (module defaults)


def _downsample_conv_kernel(w_ref, b_ref, x_ref, o_ref):
    # w_ref: (Cout, K)      VMEM, K = Cin*KH*KW; constant block index -> resident
    # b_ref: (Cout, 1)      VMEM, f32, resident bias column
    # x_ref: (1, K, St)     VMEM, space-to-depth input slab (lane axis = spatial)
    # o_ref: (1, Cout, St)  VMEM, lane-dense output slab
    acc = jnp.dot(w_ref[...], x_ref[0], preferred_element_type=jnp.float32)
    o_ref[0] = (acc + b_ref[...]).astype(o_ref.dtype)  # lane-broadcast bias add


def _round_up(a, m):
    return -(-a // m) * m


def _vmem_capacity_bytes():
    """Per-core VMEM capacity; conservative fallback (v7x physical = 64 MiB)."""
    try:
        return int(pltpu.get_tpu_info().vmem_capacity_bytes)
    except Exception:
        return 64 * 1024 * 1024


def _pick_tiling(s_total, k, cout, in_itemsize, n_batch, vmem_budget_bytes):
    """Choose the spatial tile St (multiple of 128) from a VMEM byte budget.

    Per-step VMEM ~= double-buffered input block (K, St) + output block
    (Cout, St) in the I/O dtype, plus the f32 (Cout, St) matmul temporary.
    Returns (St, num_spatial_tiles, padded_S)."""
    s128 = _round_up(max(s_total, 1), 128)
    per_lane = 2 * (k + cout) * in_itemsize + cout * 4
    st_cap = (vmem_budget_bytes // per_lane) // 128 * 128
    st_cap = max(128, min(st_cap, s128))
    n_tiles = -(-s128 // st_cap)
    # Keep at least 2 grid blocks so both v7x TensorCores get work.
    if n_batch * n_tiles < 2 and s128 > 128:
        n_tiles = 2
    st = _round_up(-(-s128 // n_tiles), 128)
    return st, n_tiles, st * n_tiles


def downsampling_block(x, weight, bias, *, vmem_budget_bytes=None):
    """Forward pass of DownsamplingBlock (Conv2d k=2, s=2, p=0).

    x:      (N, Cin, H, W)        NCHW (f32 or bf16)
    weight: (Cout, Cin, 2, 2)     Conv2d weight (OIHW)
    bias:   (Cout,)
    returns (N, Cout, H//2, W//2) NCHW, dtype of x
    """
    N, Cin, H, W = x.shape
    Cout, Cin_w, kH, kW = weight.shape
    assert Cin_w == Cin and kH == KH and kW == KW

    Ho, Wo = H // 2, W // 2
    S = Ho * Wo
    K = Cin * KH * KW
    dtype = x.dtype

    x = x[:, :, :2 * Ho, :2 * Wo]

    # im2col for a non-overlapping 2x2/stride-2 conv == space-to-depth.
    # Channel-major throughout; the flattened spatial axis lands on TPU lanes.
    # allow_input_fusion below lets XLA fold this layout pass into the
    # pallas_call operand instead of materializing it in HBM.
    x_s2d = x.reshape(N, Cin, Ho, 2, Wo, 2)
    x_s2d = jnp.transpose(x_s2d, (0, 1, 3, 5, 2, 4)).reshape(N, K, S)

    w_mat = weight.reshape(Cout, K).astype(dtype)       # (ci, kh, kw) ordering
    b_col = bias.reshape(Cout, 1).astype(jnp.float32)   # f32 epilogue add

    # Per-generation VMEM budget (v5e/v6e 128 MiB, v7x 64 MiB physical).
    vmem_cap = _vmem_capacity_bytes()
    budget = vmem_cap // 3 if vmem_budget_bytes is None else vmem_budget_bytes
    St, n_s, S_pad = _pick_tiling(S, K, Cout, jnp.dtype(dtype).itemsize, N, budget)
    vmem_limit = min(vmem_cap, budget * 2 + (2 << 20))

    if S_pad != S:  # pad spatial axis to a tile multiple; trimmed after
        x_s2d = jnp.pad(x_s2d, ((0, 0), (0, 0), (0, S_pad - S)))

    grid = (N, n_s)

    out = pl.pallas_call(
        _downsample_conv_kernel,
        out_shape=jax.ShapeDtypeStruct((N, Cout, S_pad), dtype),
        grid=grid,
        in_specs=[
            # Weights & bias: constant block index -> fetched once, resident.
            pl.BlockSpec((Cout, K), lambda n, s: (0, 0)),
            pl.BlockSpec((Cout, 1), lambda n, s: (0, 0)),
            # Input slab for this (batch, spatial tile).
            pl.BlockSpec((1, K, St), lambda n, s: (n, 0, s)),
        ],
        out_specs=pl.BlockSpec((1, Cout, St), lambda n, s: (n, 0, s)),
        compiler_params=pltpu.CompilerParams(
            dimension_semantics=("parallel", "parallel"),
            vmem_limit_bytes=int(vmem_limit),
            allow_input_fusion=[False, False, True],   # fuse the s2d producer
        ),
    )(w_mat, b_col, x_s2d)

    if S_pad != S:
        out = out[:, :, :S]
    return out.reshape(N, Cout, Ho, Wo)


def _reference(x, weight, bias):
    """Pure-JAX reference: Conv2d(kernel=2, stride=2, padding=0)."""
    y = lax.conv_general_dilated(
        x.astype(jnp.float32), weight.astype(jnp.float32),
        window_strides=(2, 2), padding="VALID",
        dimension_numbers=("NCHW", "OIHW", "NCHW"))
    return y + bias.reshape(1, -1, 1, 1)


if __name__ == "__main__":
    # Small deterministic problem: batch=2, in_channels=4, out_channels=8, 16x16.
    N, Cin, Cout, H, W = 2, 4, 8, 16, 16

    key = jax.random.PRNGKey(0)
    kx, kw, kb = jax.random.split(key, 3)
    x = jax.random.normal(kx, (N, Cin, H, W), dtype=jnp.float32)
    w = 0.1 * jax.random.normal(kw, (Cout, Cin, KH, KW), dtype=jnp.float32)
    b = 0.1 * jax.random.normal(kb, (Cout,), dtype=jnp.float32)

    out = jax.block_until_ready(downsampling_block(x, w, b))
    ref = jax.block_until_ready(_reference(x, w, b))

    assert out.shape == (N, Cout, H // 2, W // 2), out.shape
    assert jnp.allclose(out, ref, atol=1e-4, rtol=1e-4), \
        float(jnp.max(jnp.abs(out - ref)))

    print("KERNEL_OK")
</pallas_src>

<mosaic_0001>
module attributes {stable_mosaic.version = 11 : i64} {
  func.func @_downsample_conv_kernel(%arg0: i32, %arg1: i32, %arg2: memref<8x16xf32, #tpu.memory_space<vmem>>, %arg3: memref<8x1xf32, #tpu.memory_space<vmem>>, %arg4: memref<1x16x128xf32, #tpu.memory_space<vmem>>, %arg5: memref<1x8x128xf32, #tpu.memory_space<vmem>>) attributes {dimension_semantics = [#tpu.dimension_semantics<parallel>, #tpu.dimension_semantics<parallel>], iteration_bounds = array<i64: 2, 1>, scalar_prefetch = 0 : i64, scratch_operands = 0 : i64, tpu.core_type = #tpu.core_type<tc>, window_params = [{pipeline_mode = #tpu.pipeline_mode<synchronous>, transform_indices = @transform_0, window_bounds = array<i64: 8, 16>}, {pipeline_mode = #tpu.pipeline_mode<synchronous>, transform_indices = @transform_1, window_bounds = array<i64: 8, 1>}, {transform_indices = @transform_2, window_bounds = array<i64: 1, 16, 128>}, {transform_indices = @transform_3, window_bounds = array<i64: 1, 8, 128>}]} {
    %c0 = arith.constant 0 : index
    %c0_0 = arith.constant 0 : index
    %0 = vector.load %arg2[%c0, %c0_0] : memref<8x16xf32, #tpu.memory_space<vmem>>, vector<8x16xf32>
    %c0_1 = arith.constant 0 : index
    %c0_2 = arith.constant 0 : index
    %c0_3 = arith.constant 0 : index
    %1 = vector.load %arg4[%c0_1, %c0_2, %c0_3] : memref<1x16x128xf32, #tpu.memory_space<vmem>>, vector<1x16x128xf32>
    %2 = vector.shape_cast %1 : vector<1x16x128xf32> to vector<16x128xf32>
    %cst = arith.constant dense<0.000000e+00> : vector<8x128xf32>
    %3 = tpu.matmul %0, %2, %cst {dimension_numbers = #tpu.dot_dimension_numbers<[1], [0], [0], [1], [0, 0, 1, 1], [], []>} : vector<8x16xf32>, vector<16x128xf32>, vector<8x128xf32> -> vector<8x128xf32>
    %c0_4 = arith.constant 0 : index
    %c0_5 = arith.constant 0 : index
    %4 = vector.load %arg3[%c0_4, %c0_5] : memref<8x1xf32, #tpu.memory_space<vmem>>, vector<8x1xf32>
    %5 = vector.broadcast %4 : vector<8x1xf32> to vector<8x128xf32>
    %6 = arith.addf %3, %5 : vector<8x128xf32>
    %c0_6 = arith.constant 0 : index
    %c0_7 = arith.constant 0 : index
    %c0_8 = arith.constant 0 : index
    %7 = vector.load %arg5[%c0_6, %c0_7, %c0_8] : memref<1x8x128xf32, #tpu.memory_space<vmem>>, vector<1x8x128xf32>
    %8 = vector.shape_cast %7 : vector<1x8x128xf32> to vector<8x128xf32>
    %9 = vector.shape_cast %6 : vector<8x128xf32> to vector<1x8x128xf32>
    tpu.vector_store %arg5[%c0_6, %c0_7, %c0_8], %9 {strides = array<i32>} : memref<1x8x128xf32, #tpu.memory_space<vmem>>, vector<1x8x128xf32>,
    return
  }
  func.func @transform_0(%arg0: i32, %arg1: i32) -> (i32, i32) {
    %c0_i32 = arith.constant 0 : i32
    %c0_i32_0 = arith.constant 0 : i32
    %c0_i32_1 = arith.constant 0 : i32
    return %c0_i32, %c0_i32_0 : i32, i32
  }
  func.func @transform_1(%arg0: i32, %arg1: i32) -> (i32, i32) {
    %c0_i32 = arith.constant 0 : i32
    %c0_i32_0 = arith.constant 0 : i32
    %c0_i32_1 = arith.constant 0 : i32
    return %c0_i32, %c0_i32_0 : i32, i32
  }
  func.func @transform_2(%arg0: i32, %arg1: i32) -> (i32, i32, i32) {
    %c0_i32 = arith.constant 0 : i32
    %c0_i32_0 = arith.constant 0 : i32
    return %arg0, %c0_i32, %arg1 : i32, i32, i32
  }
  func.func @transform_3(%arg0: i32, %arg1: i32) -> (i32, i32, i32) {
    %c0_i32 = arith.constant 0 : i32
    %c0_i32_0 = arith.constant 0 : i32
    return %arg0, %c0_i32, %arg1 : i32, i32, i32
  }
}

</mosaic_0001>

<llo_original>
// kernel: tpu_custom_call.1
$region0: #{tpu_custom_call.1}
  #allocation0 [shape = 'u32[]', space=smem, size = 0x4, offset = 0x4, fixed_abs, tag = 'smem constant byte address 0x4 - core index']
  #allocation1 [shape = 'u32[144,128]{1,0:T(1,128)}', space=vmem, size = 0x12000, scoped, tag = 'internal scratch']
  %s0 = inlined_call_operand.vmem [shape: f32[8,16], index: 0, kind: input, shape index: {}]
  %s1 = inlined_call_operand.vmem [shape: f32[8,1], index: 1, kind: input, shape index: {}]
  %s2 = inlined_call_operand.hbm [shape: f32[2,16,128], index: 2, kind: input, shape index: {}]
  %s3 = inlined_call_operand.hbm [shape: f32[2,8,128], index: 3, kind: output, shape index: {}]
  %s4 = sld [smem:[#allocation0]]
  $region49: #{tpu_custom_call.1} parent=0
    _
  %s6 = ssub.s32 1, %s4
  %s7 = scalar_select 0, %s6, %s4
  $region1: #{tpu_custom_call.1} parent=0
    #allocation2 [shape = 'u8[16384]{0}', space=vmem, size = 0x4000, scoped, tag = 'input window, operand 2']
    #allocation3 [shape = 's32[2]{0}', space=sflag, size = 0x8, scoped, tag = 'scoped memory for tpu_custom_call.1']
    #allocation4 [shape = 's32[2]{0}', space=sflag, size = 0x8, scoped, tag = 'scoped memory for tpu_custom_call.1']
    #allocation5 [shape = 'u8[8192]{0}', space=vmem, size = 0x2000, scoped, tag = 'output window, operand 0']
    %8 = vsyncpa [#allocation3], 0
    %s9 = scalar_lea.sflag [#allocation3], 1
    %10 = vsyncpa %s9, 0
    %11 = vsyncpa [#allocation4], 0
    %s12 = scalar_lea.sflag [#allocation4], 1
    %13 = vsyncpa %s12, 0
    loop: start=0, step=1, limit=4
    $region2: #{tpu_custom_call.1} parent=1 // loop_pre_header
      _
    $region3: #{tpu_custom_call.1} parent=1 // loop_header
      %s15 = sphi 0, %s19
      %p16 = scmp.ge.s32.totalorder %s15, 4
      %s22 = sphi 0, %s34
      %s23 = sphi 0, %s30
      %s24 = sphi 0, %s22
      %s25 = sphi 0, %s23
      %s26 = sphi 0, %s24
      %s27 = sphi 0, %s25
      %s35 = sphi 0, %s35
      %s37 = sphi 0, %s35
      %s38 = sphi 0, %s37
      %s52 = sphi 0, %s38
      %s56 = sphi 0, %s56
      %s58 = sphi 0, %s56
      %s59 = sphi 0, %s58
      %s73 = sphi 0, %s59
      %s81 = sphi 0, %s83
      %s84 = sphi 0, %s81
      %s85 = sphi 0, %s84
      %s101 = sphi 0, %s85
      %s109 = sphi 0, %s111
      %s112 = sphi 0, %s109
      %s113 = sphi 0, %s112
      %s129 = sphi 0, %s113
    $region4: #{tpu_custom_call.1} parent=1 // loop_header_branch
      %18 = sbr.rel (%p16) target = $region8
    $region5: #{tpu_custom_call.1} parent=1 // loop_body
      %s20 = ssub.s32 %s15, 1
      %s21 = ssub.s32 %s15, 2
      %s28 = sadd.s32 1, %s23
      %p29 = scmp.ge.s32.totalorder %s28, 1
      %s30 = scalar_select %p29, 0, %s28
      %s31 = sadd.s32 1, %s22
      %s32 = scalar_select %p29, %s31, %s22
      %p33 = scmp.ge.s32.totalorder %s32, 2
      %s34 = scalar_select %p33, 0, %s32
      %s36 = sadd.s32 %s35, 1
      %p39 = scmp.eq.s32.totalorder %s15, 1
      %p40 = scmp.ne.s32.totalorder %s35, %s37
      %p41 = scmp.eq.s32.totalorder %s15, 0
      %p42 = por %p40, %p41
      %p43 = scmp.ne.s32.totalorder %s35, %s37
      %p44 = scmp.eq.s32.totalorder %s20, 1
      %p45 = por %p43, %p44
      %p46 = scmp.ne.s32.totalorder %s37, %s38
      %p47 = scmp.eq.s32.totalorder %s20, 0
      %p48 = por %p46, %p47
      %p49 = scmp.ne.s32.totalorder %s37, %s38
      %p50 = scmp.eq.s32.totalorder %s21, 1
      %p51 = por %p49, %p50
      %p53 = scmp.ne.s32.totalorder %s38, %s52
      %p54 = scmp.eq.s32.totalorder %s21, 0
      %p55 = por %p53, %p54
      %s57 = sadd.s32 %s56, 1
      %p60 = scmp.eq.s32.totalorder %s15, 1
      %p61 = scmp.ne.s32.totalorder %s56, %s58
      %p62 = scmp.eq.s32.totalorder %s15, 0
      %p63 = por %p61, %p62
      %p64 = scmp.ne.s32.totalorder %s56, %s58
      %p65 = scmp.eq.s32.totalorder %s20, 1
      %p66 = por %p64, %p65
      %p67 = scmp.ne.s32.totalorder %s58, %s59
      %p68 = scmp.eq.s32.totalorder %s20, 0
      %p69 = por %p67, %p68
      %p70 = scmp.ne.s32.totalorder %s58, %s59
      %p71 = scmp.eq.s32.totalorder %s21, 1
      %p72 = por %p70, %p71
      %p74 = scmp.ne.s32.totalorder %s59, %s73
      %p75 = scmp.eq.s32.totalorder %s21, 0
      %p76 = por %p74, %p75
      %s77 = ssub.s32 %s22, %s34
      %s78 = ssub.s32 %s23, %s30
      %s79 = sor.u32 %s77, %s78
      %p80 = scmp.eq.s32.totalorder %s79, 0
      %s82 = sadd.s32 %s81, 1
      %s83 = scalar_select %p80, %s81, %s82
      %p86 = pneg %p80
      %p87 = scmp.eq.s32.totalorder %s15, 1
      %p88 = por %p86, %p87
      %p89 = scmp.ne.s32.totalorder %s81, %s84
      %p90 = scmp.eq.s32.totalorder %s15, 0
      %p91 = por %p89, %p90
      %p92 = scmp.ne.s32.totalorder %s81, %s84
      %p93 = scmp.eq.s32.totalorder %s20, 1
      %p94 = por %p92, %p93
      %p95 = scmp.ne.s32.totalorder %s84, %s85
      %p96 = scmp.eq.s32.totalorder %s20, 0
      %p97 = por %p95, %p96
      %p98 = scmp.ne.s32.totalorder %s84, %s85
      %p99 = scmp.eq.s32.totalorder %s21, 1
      %p100 = por %p98, %p99
      %p102 = scmp.ne.s32.totalorder %s85, %s101
      %p103 = scmp.eq.s32.totalorder %s21, 0
      %p104 = por %p102, %p103
      %s105 = ssub.s32 %s22, %s34
      %s106 = ssub.s32 %s23, %s30
      %s107 = sor.u32 %s105, %s106
      %p108 = scmp.eq.s32.totalorder %s107, 0
      %s110 = sadd.s32 %s109, 1
      %s111 = scalar_select %p108, %s109, %s110
      %p114 = pneg %p108
      %p115 = scmp.eq.s32.totalorder %s15, 1
      %p116 = por %p114, %p115
      %p117 = scmp.ne.s32.totalorder %s109, %s112
      %p118 = scmp.eq.s32.totalorder %s15, 0
      %p119 = por %p117, %p118
      %p120 = scmp.ne.s32.totalorder %s109, %s112
      %p121 = scmp.eq.s32.totalorder %s20, 1
      %p122 = por %p120, %p121
      %p123 = scmp.ne.s32.totalorder %s112, %s113
      %p124 = scmp.eq.s32.totalorder %s20, 0
      %p125 = por %p123, %p124
      %p126 = scmp.ne.s32.totalorder %s112, %s113
      %p127 = scmp.eq.s32.totalorder %s21, 1
      %p128 = por %p126, %p127
      %p130 = scmp.ne.s32.totalorder %s113, %s129
      %p131 = scmp.eq.s32.totalorder %s21, 0
      %p132 = por %p130, %p131
      %p133 = scmp.le.s32.totalorder 1, %s15
      %p134 = scmp.lt.s32.totalorder %s15, 3
      %p135 = pnand %p133, %p134
      %p136 = pneg %p135
      // Predicated region
      $region9: #{tpu_custom_call.1} parent=5 // pred_check
        _
      $region10: #{tpu_custom_call.1} parent=5 // pred_check_branch
        %138 = sbr.rel (%p135) target = $region12
      $region11: #{tpu_custom_call.1} parent=5 // pred_region
        %s139 = ssub.s32 %s15, 1
        // Predicated region
        $region13: #{tpu_custom_call.1} parent=11 // pred_check
          %p140 = pneg %p48
        $region14: #{tpu_custom_call.1} parent=11 // pred_check_branch
          %142 = sbr.rel (%p140) target = $region16
        $region15: #{tpu_custom_call.1} parent=11 // pred_region
          _
        $region16: #{tpu_custom_call.1} parent=11 // pred_fallthru
          _
        // Predicated region
        $region17: #{tpu_custom_call.1} parent=11 // pred_check
          %p143 = pneg %p69
        $region18: #{tpu_custom_call.1} parent=11 // pred_check_branch
          %145 = sbr.rel (%p143) target = $region20
        $region19: #{tpu_custom_call.1} parent=11 // pred_region
          _
        $region20: #{tpu_custom_call.1} parent=11 // pred_fallthru
          _
      $region12: #{tpu_custom_call.1} parent=5 // pred_fallthru
        _
      %p146 = scmp.lt.s32.totalorder %s15, 2
      // Predicated region
      $region21: #{tpu_custom_call.1} parent=5 // pred_check
        %p147 = pneg %p146
      $region22: #{tpu_custom_call.1} parent=5 // pred_check_branch
        %149 = sbr.rel (%p147) target = $region24
      $region23: #{tpu_custom_call.1} parent=5 // pred_region
        // Predicated region
        $region25: #{tpu_custom_call.1} parent=23 // pred_check
          %p150 = pneg %p91
        $region26: #{tpu_custom_call.1} parent=23 // pred_check_branch
          %152 = sbr.rel (%p150) target = $region28
        $region27: #{tpu_custom_call.1} parent=23 // pred_region
          %s153 = sand.u32 %s81, 1
          %s154 = scalar_lea.sflag [#allocation3], %s153
          %s155 = sand.u32 %s81, 1
          %s156 = smul.addr %s155, 16
          %s157 = scalar_lea.vmem [#allocation2], %s156
          %s159 = ssub.s32 256, 256
          %160 = vsyncadd %s154, %s159
          %s161 = smul.addr %s22, 2
          %s162 = sadd.s32 %s23, %s161
          %s163 = smul.addr %s162, 128
          %s164 = scalar_lea.hbm %s2, %s163
          %s165 = sshll.u32 %s157, 4
          %s166 = int_to_ptr.vmem [resolvable:$true] %s165
          %171 = dma.hbm_to_vmem [thread:$0]  %s164, 256, %s166, %s154, 128, 128, 8
        $region28: #{tpu_custom_call.1} parent=23 // pred_fallthru
          _
      $region24: #{tpu_custom_call.1} parent=5 // pred_fallthru
        _
      %p172 = scmp.le.s32.totalorder 1, %s15
      %p173 = scmp.lt.s32.totalorder %s15, 3
      %p174 = pnand %p172, %p173
      %p175 = pneg %p174
      // Predicated region
      $region29: #{tpu_custom_call.1} parent=5 // pred_check
        _
      $region30: #{tpu_custom_call.1} parent=5 // pred_check_branch
        %177 = sbr.rel (%p174) target = $region32
      $region31: #{tpu_custom_call.1} parent=5 // pred_region
        %s178 = ssub.s32 %s15, 1
        %s179 = sand.u32 %s84, 1
        %s180 = scalar_lea.sflag [#allocation3], %s179
        %s181 = sand.u32 %s84, 1
        %s182 = smul.addr %s181, 16
        %s183 = scalar_lea.vmem [#allocation2], %s182
        // Predicated region
        $region33: #{tpu_custom_call.1} parent=31 // pred_check
          %p184 = pneg %p97
        $region34: #{tpu_custom_call.1} parent=31 // pred_check_branch
          %186 = sbr.rel (%p184) target = $region36
        $region35: #{tpu_custom_call.1} parent=31 // pred_region
          %187 = dma.done %s180, 256
        $region36: #{tpu_custom_call.1} parent=31 // pred_fallthru
          _
        %p188 = pneg %p48
        %p189 = pneg %p45
        %p190 = pneg %p69
        %p191 = pneg %p66
        %s192 = sand.u32 %s84, 1
        %s193 = scalar_lea.sflag [#allocation3], %s192
        %s194 = sand.u32 %s84, 1
        %s195 = smul.addr %s194, 16
        %s196 = scalar_lea.vmem [#allocation2], %s195
        %p197 = pneg %p97
        %p198 = pneg %p94
        %p199 = pneg %p125
        %p200 = pneg %p122
        %s201 = sand.u32 %s112, 1
        %s202 = scalar_lea.sflag [#allocation4], %s201
        %s203 = sand.u32 %s112, 1
        %s204 = smul.addr %s203, 8
        %s205 = scalar_lea.vmem [#allocation5], %s204
        %v206 = vld [vmem:[%s0] sm:$0xff]
        %v207 = vld [vmem:[%s183] sm:$0xff]
        %v208 = vld [vmem:[%s183 + $0x8] sm:$0xff]
        %v209 = vld [vmem:[%s1] sm:$0xff]
        %211 = vset.pattern.permute.xlu0 0
        %212 = vperm.xlu0 %211, %v209
        %v213 = vpop.permute.xlu0 %212
        %vm215 = vcmask 130048
        %v217 = vsel %vm215, %v206, 0
        %219 = vmatprep.subr.mxu0 0.0
        %220 = vmatpush1.msra.mxu0 %v207
        %221 = vmatprep.subr.mxu0 0.0
        %222 = vmatpush1.msra.mxu0 %v208
        %223 = vmatprep.subr.mxu0 0.0
        %224 = vmatpush1.msra.mxu0 0.0
        %225 = vmatprep.subr.mxu0 0.0
        %226 = vmatpush1.msra.mxu0 0.0
        %227 = vmatprep.subr.mxu0 0.0
        %228 = vmatpush1.msra.mxu0 0.0
        %229 = vmatprep.subr.mxu0 0.0
        %230 = vmatpush1.msra.mxu0 0.0
        %231 = vmatprep.subr.mxu0 0.0
        %232 = vmatpush1.msra.mxu0 0.0
        %233 = vmatprep.subr.mxu0 0.0
        %234 = vmatpush1.msra.mxu0 0.0
        %235 = vmatprep.subr.mxu0 0.0
        %236 = vmatpush1.msra.mxu0 0.0
        %237 = vmatprep.subr.mxu0 0.0
        %238 = vmatpush1.msra.mxu0 0.0
        %239 = vmatprep.subr.mxu0 0.0
        %240 = vmatpush1.msra.mxu0 0.0
        %241 = vmatprep.subr.mxu0 0.0
        %242 = vmatpush1.msra.mxu0 0.0
        %243 = vmatprep.subr.mxu0 0.0
        %244 = vmatpush1.msra.mxu0 0.0
        %245 = vmatprep.subr.mxu0 0.0
        %246 = vmatpush1.msra.mxu0 0.0
        %247 = vmatprep.subr.mxu0 0.0
        %248 = vmatpush1.msra.mxu0 0.0
        %249 = vmatprep.subr.mxu0 0.0
        %250 = vmatpush1.msra.mxu0 0.0
        %251 = vmatprep.subr.mxu0 0.0
        %252 = vmatpush1.msra.mxu0 0.0
        %253 = vmatprep.subr.mxu0 0.0
        %254 = vmatpush1.msra.mxu0 0.0
        %255 = vmatprep.subr.mxu0 0.0
        %256 = vmatpush1.msra.mxu0 0.0
        %257 = vmatprep.subr.mxu0 0.0
        %258 = vmatpush1.msra.mxu0 0.0
        %259 = vmatprep.subr.mxu0 0.0
        %260 = vmatpush1.msra.mxu0 0.0
        %261 = vmatprep.subr.mxu0 0.0
        %262 = vmatpush1.msra.mxu0 0.0
        %263 = vmatprep.subr.mxu0 0.0
        %264 = vmatpush1.msra.mxu0 0.0
        %265 = vmatprep.subr.mxu0 0.0
        %266 = vmatpush1.msra.mxu0 0.0
        %267 = vmatprep.subr.mxu0 0.0
        %268 = vmatpush1.msra.mxu0 0.0
        %269 = vmatprep.subr.mxu0 0.0
        %270 = vmatpush1.msra.mxu0 0.0
        %271 = vmatprep.subr.mxu0 0.0
        %272 = vmatpush1.msra.mxu0 0.0
        %273 = vmatprep.subr.mxu0 0.0
        %274 = vmatpush1.msra.mxu0 0.0
        %275 = vmatprep.subr.mxu0 0.0
        %276 = vmatpush1.msra.mxu0 0.0
        %277 = vmatprep.subr.mxu0 0.0
        %278 = vmatpush1.msra.mxu0 0.0
        %279 = vmatprep.subr.mxu0 0.0
        %280 = vmatpush1.msra.mxu0 0.0
        %281 = vmatprep.subr.mxu0 0.0
        %282 = vmatpush1.msra.mxu0 0.0
        %283 = vmatprep.mubr.f32.mxu0 0.0
        %284 = vmatmul.mubr.f32.gmra.mrb[0].mxu0 %v217
        %v285 = vpop.f32.mrb[0].mxu0
        %v286 = vadd.f32 %v213, %v285
        %v287 = vpop.f32.mrb[0].mxu0
        %288 = vdwg.mxu0
        %289 = vst [vmem:[%s205] sm:$0xff] %v286
        %s290 = sand.u32 %s112, 1
        %s291 = scalar_lea.sflag [#allocation4], %s290
        %s292 = sand.u32 %s112, 1
        %s293 = smul.addr %s292, 8
        %s294 = scalar_lea.vmem [#allocation5], %s293
        // Predicated region
        $region37: #{tpu_custom_call.1} parent=31 // pred_check
          %p295 = pneg %p122
        $region38: #{tpu_custom_call.1} parent=31 // pred_check_branch
          %297 = sbr.rel (%p295) target = $region40
        $region39: #{tpu_custom_call.1} parent=31 // pred_region
          %s299 = ssub.s32 128, 128
          %300 = vsyncadd %s291, %s299
          %s301 = sadd.s32 %s25, %s24
          %s302 = smul.addr %s301, 128
          %s303 = scalar_lea.hbm %s3, %s302
          %s305 = sshll.u32 %s294, 4
          %s306 = int_to_ptr.vmem [resolvable:$true] %s305
          %308 = dma.vmem_to_hbm [thread:$0]  %s306, 128, %s303, %s291
        $region40: #{tpu_custom_call.1} parent=31 // pred_fallthru
          _
      $region32: #{tpu_custom_call.1} parent=5 // pred_fallthru
        _
      %p309 = scmp.le.s32.totalorder 2, %s15
      // Predicated region
      $region41: #{tpu_custom_call.1} parent=5 // pred_check
        %p310 = pneg %p309
      $region42: #{tpu_custom_call.1} parent=5 // pred_check_branch
        %312 = sbr.rel (%p310) target = $region44
      $region43: #{tpu_custom_call.1} parent=5 // pred_region
        %s313 = ssub.s32 %s15, 2
        // Predicated region
        $region45: #{tpu_custom_call.1} parent=43 // pred_check
          %p314 = pneg %p128
        $region46: #{tpu_custom_call.1} parent=43 // pred_check_branch
          %316 = sbr.rel (%p314) target = $region48
        $region47: #{tpu_custom_call.1} parent=43 // pred_region
          %s317 = sand.u32 %s113, 1
          %s318 = scalar_lea.sflag [#allocation4], %s317
          %s319 = sand.u32 %s113, 1
          %s320 = smul.addr %s319, 8
          %s321 = scalar_lea.vmem [#allocation5], %s320
          %322 = dma.done %s318, 128
        $region48: #{tpu_custom_call.1} parent=43 // pred_fallthru
          _
      $region44: #{tpu_custom_call.1} parent=5 // pred_fallthru
        _
    $region6: #{tpu_custom_call.1} parent=1 // loop_footer
      %s19 = sadd.s32 1, %s15
    $region7: #{tpu_custom_call.1} parent=1 // loop_footer_branch
      %14 = sbr.rel target = $region3
    $region8: #{tpu_custom_call.1} parent=1 // loop_exit
      _
    %323 = vsyncpa [#allocation3], 1
    %s324 = scalar_lea.sflag [#allocation3], 1
    %325 = vsyncpa %s324, 1
    %326 = vsyncpa [#allocation4], 1
    %s327 = scalar_lea.sflag [#allocation4], 1
    %328 = vsyncpa %s327, 1

</llo_original>
